<compile_context>
chip_gen: v7x
topology: tpu7x:2x2x1
jax: 0.10.0
libtpu: 0.0.40
codegen_flags: <defaults>
</compile_context>

<pallas_src>
import jax
import jax.numpy as jnp
from jax.experimental import pallas as pl
from jax.experimental.pallas import tpu as pltpu


_LANE_CANDIDATES = (512, 256, 128)      # preferred lane-dense widths (multiples of 128)
_VMEM_BLOCK_BUDGET = 12 * 1024 * 1024   # bytes for 3 refs x 2 pipeline buffers (fits every gen's default)
_MIN_PALLAS_ELEMS = 8192                # below this a standalone pallas_call loses to an XLA-fused add


def _add_kernel(x_ref, sc_ref, o_ref):
    # Elementwise hot path: x + self_connection_temp
    o_ref[...] = x_ref[...] + sc_ref[...]


def _round_up(v: int, m: int) -> int:
    return ((v + m - 1) // m) * m


def _round_down(v: int, m: int) -> int:
    return (v // m) * m


def _launch_add(x2: jax.Array, sc2: jax.Array) -> jax.Array:
    rows, cols = x2.shape
    dtype = x2.dtype
    itemsize = jnp.dtype(dtype).itemsize
    # Sub-32-bit dtypes pack along sublanes: 8 rows f32, 16 bf16, 32 int8/fp8.
    sublane = 8 * max(1, 4 // itemsize)
    per_buf = _VMEM_BLOCK_BUDGET // 6   # bytes per buffer slot (3 refs x double-buffer)

    # Column tile.  VMEM stores blocks in (sublane, 128) native tiles, so the
    # budget must use the lane-padded width, not the logical one.
    padded_cols = _round_up(cols, 128)
    if padded_cols * itemsize * sublane <= per_buf:
        tc = cols                       # full last dim: always a legal block shape
        padded_tc = padded_cols
    else:
        tc = 512                        # lane-dense slice (multiple of 128); ragged tail masked
        padded_tc = 512

    # Row tile from the VMEM budget.
    budget_rows = per_buf // (padded_tc * itemsize)
    tr = max(sublane, _round_down(budget_rows, sublane))
    tr = min(tr, rows)                  # tr == rows (full dim) is legal even if not a multiple of 8

    # Keep >= 2 grid steps when possible: megacore (v7x) splits parallel grid
    # axes across TensorCores and the pipeline gets something to overlap.
    if pl.cdiv(rows, tr) * pl.cdiv(cols, tc) < 2 and rows >= 2 * sublane:
        tr = max(sublane, _round_down(pl.cdiv(rows, 2), sublane))

    grid = (pl.cdiv(rows, tr), pl.cdiv(cols, tc))
    spec = pl.BlockSpec((tr, tc), lambda i, j: (i, j))

    return pl.pallas_call(
        _add_kernel,
        out_shape=jax.ShapeDtypeStruct((rows, cols), dtype),
        grid_spec=pltpu.PrefetchScalarGridSpec(
            num_scalar_prefetch=0,
            grid=grid,
            in_specs=[spec, spec],
            out_specs=spec,
        ),
        input_output_aliases={0: 0},    # in-place semantics: data[x] += temp
        compiler_params=pltpu.CompilerParams(
            dimension_semantics=("parallel", "parallel"),
        ),
    )(x2, sc2)


def self_connection_outro(x: jax.Array, self_conn_temp: jax.Array,
                          *, force_pallas: bool = False) -> jax.Array:
    """Pallas implementation of SelfConnectionOutro.forward on the tensors.

    Returns the updated node-feature tensor (dict bookkeeping / key deletion
    of the original module is pure Python glue, see self_connection_outro_module).
    """
    assert x.shape == self_conn_temp.shape, "x and self_connection_temp must match"
    assert x.dtype == self_conn_temp.dtype
    orig_shape = x.shape
    total = int(x.size)

    if total == 0:
        return x
    if total < _MIN_PALLAS_ELEMS and not force_pallas:
        # Tiny tensors: a standalone pallas_call costs more than the HBM
        # traffic itself; let XLA fuse the add with producers/consumers.
        return x + self_conn_temp

    # Choose a zero-copy 2-D view (reshapes of contiguous arrays are free).
    lane = None
    for cand in _LANE_CANDIDATES:
        if total % cand == 0:
            lane = cand
            break
    if lane is not None:
        rows, cols = total // lane, lane                       # lane-dense, unmasked stores
    else:
        cols = orig_shape[-1] if len(orig_shape) >= 2 else total
        rows = total // cols                                   # full-last-dim blocks, zero copies

    x2 = x.reshape(rows, cols)
    sc2 = self_conn_temp.reshape(rows, cols)
    out2 = _launch_add(x2, sc2)
    return out2.reshape(orig_shape)


def self_connection_outro_module(data: dict,
                                 key_x: str = "x",
                                 key_temp: str = "self_connection_temp") -> dict:
    """Mirror of the nn.Module semantics on a dict of arrays."""
    data[key_x] = self_connection_outro(data[key_x], data[key_temp])
    del data[key_temp]
    return data


if __name__ == "__main__":
    key = jax.random.PRNGKey(0)
    k1, k2, k3, k4 = jax.random.split(key, 4)

    # Case 1: ragged feature dim (61) -> exercises the no-copy full-last-dim path.
    n1, f1 = 500, 61
    x1 = jax.random.normal(k1, (n1, f1), dtype=jnp.float32)
    t1 = jax.random.normal(k2, (n1, f1), dtype=jnp.float32)
    ref1 = x1 + t1                       # reference BEFORE the aliased kernel call
    d1 = {"x": x1, "self_connection_temp": t1}
    out1 = self_connection_outro_module(d1)
    r1 = jax.block_until_ready(out1["x"])
    assert "self_connection_temp" not in out1
    assert r1.shape == (n1, f1)
    assert jnp.allclose(r1, ref1, atol=1e-6), "case 1 mismatch vs reference"

    # Case 2: 128-divisible total -> exercises the lane-dense flattened path.
    n2, f2 = 384, 128
    x2 = jax.random.normal(k3, (n2, f2), dtype=jnp.float32)
    t2 = jax.random.normal(k4, (n2, f2), dtype=jnp.float32)
    ref2 = x2 + t2
    d2 = {"x": x2, "self_connection_temp": t2}
    out2 = self_connection_outro_module(d2)
    r2 = jax.block_until_ready(out2["x"])
    assert "self_connection_temp" not in out2
    assert r2.shape == (n2, f2)
    assert jnp.allclose(r2, ref2, atol=1e-6), "case 2 mismatch vs reference"

    print("KERNEL_OK")
</pallas_src>

<mosaic_0001>
module attributes {stable_mosaic.version = 11 : i64} {
  func.func @_add_kernel(%arg0: i32, %arg1: i32, %arg2: memref<248x61xf32, #tpu.memory_space<vmem>>, %arg3: memref<248x61xf32, #tpu.memory_space<vmem>>, %arg4: memref<248x61xf32, #tpu.memory_space<vmem>>) attributes {dimension_semantics = [#tpu.dimension_semantics<parallel>, #tpu.dimension_semantics<parallel>], iteration_bounds = array<i64: 3, 1>, scalar_prefetch = 0 : i64, scratch_operands = 0 : i64, tpu.core_type = #tpu.core_type<tc>, window_params = [{transform_indices = @transform_0, window_bounds = array<i64: 248, 61>}, {transform_indices = @transform_1, window_bounds = array<i64: 248, 61>}, {transform_indices = @transform_2, window_bounds = array<i64: 248, 61>}]} {
    %c0 = arith.constant 0 : index
    %c0_0 = arith.constant 0 : index
    %0 = vector.load %arg2[%c0, %c0_0] : memref<248x61xf32, #tpu.memory_space<vmem>>, vector<248x61xf32>
    %c0_1 = arith.constant 0 : index
    %c0_2 = arith.constant 0 : index
    %1 = vector.load %arg3[%c0_1, %c0_2] : memref<248x61xf32, #tpu.memory_space<vmem>>, vector<248x61xf32>
    %2 = arith.addf %0, %1 : vector<248x61xf32>
    %c0_3 = arith.constant 0 : index
    %c0_4 = arith.constant 0 : index
    %3 = vector.load %arg4[%c0_3, %c0_4] : memref<248x61xf32, #tpu.memory_space<vmem>>, vector<248x61xf32>
    tpu.vector_store %arg4[%c0_3, %c0_4], %2 {strides = array<i32>} : memref<248x61xf32, #tpu.memory_space<vmem>>, vector<248x61xf32>,
    return
  }
  func.func @transform_0(%arg0: i32, %arg1: i32) -> (i32, i32) {
    %c0_i32 = arith.constant 0 : i32
    return %arg0, %arg1 : i32, i32
  }
  func.func @transform_1(%arg0: i32, %arg1: i32) -> (i32, i32) {
    %c0_i32 = arith.constant 0 : i32
    return %arg0, %arg1 : i32, i32
  }
  func.func @transform_2(%arg0: i32, %arg1: i32) -> (i32, i32) {
    %c0_i32 = arith.constant 0 : i32
    return %arg0, %arg1 : i32, i32
  }
}

</mosaic_0001>

<llo_original>
// kernel: tpu_custom_call.1
$region0: #{tpu_custom_call.1}
  #allocation0 [shape = 'u32[]', space=smem, size = 0x4, offset = 0x4, fixed_abs, tag = 'smem constant byte address 0x4 - core index']
  #allocation1 [shape = 'u32[144,128]{1,0:T(1,128)}', space=vmem, size = 0x12000, scoped, tag = 'internal scratch']
  %s0 = inlined_call_operand.vmem [shape: f32[500,61], index: 0, kind: input, shape index: {}, may-alias: {0,2}]
  %s1 = inlined_call_operand.vmem [shape: f32[500,61], index: 1, kind: input, shape index: {}]
  %s2 = inlined_call_operand.vmem [shape: f32[500,61], index: 2, kind: output, shape index: {}, may-alias: {0,2}]
  %s3 = sld [smem:[#allocation0]]
  $region89: #{tpu_custom_call.1} parent=0
    _
  %s5 = ssub.s32 1, %s3
  %s6 = scalar_select 0, %s5, %s3
  $region1: #{tpu_custom_call.1} parent=0
    #allocation2 [shape = 'u8[253952]{0}', space=vmem, size = 0x3e000, scoped, tag = 'output window, operand 0']
    loop: start=0, step=1, limit=5
    $region2: #{tpu_custom_call.1} parent=1 // loop_pre_header
      _
    $region3: #{tpu_custom_call.1} parent=1 // loop_header
      %s8 = sphi 0, %s12
      %p9 = scmp.ge.s32.totalorder %s8, 5
      %s15 = sphi 0, %s27
      %s16 = sphi 0, %s23
      %s17 = sphi 0, %s15
      %s18 = sphi 0, %s16
      %s19 = sphi 0, %s17
      %s20 = sphi 0, %s18
      %s32 = sphi 0, %s34
      %s35 = sphi 0, %s32
      %s36 = sphi 0, %s35
      %s52 = sphi 0, %s36
      %s60 = sphi 0, %s62
      %s63 = sphi 0, %s60
      %s64 = sphi 0, %s63
      %s80 = sphi 0, %s64
      %s88 = sphi 0, %s90
      %s91 = sphi 0, %s88
      %s92 = sphi 0, %s91
      %s108 = sphi 0, %s92
    $region4: #{tpu_custom_call.1} parent=1 // loop_header_branch
      %11 = sbr.rel (%p9) target = $region8
    $region5: #{tpu_custom_call.1} parent=1 // loop_body
      %s13 = ssub.s32 %s8, 1
      %s14 = ssub.s32 %s8, 2
      %s21 = sadd.s32 1, %s16
      %p22 = scmp.ge.s32.totalorder %s21, 1
      %s23 = scalar_select %p22, 0, %s21
      %s24 = sadd.s32 1, %s15
      %s25 = scalar_select %p22, %s24, %s15
      %p26 = scmp.ge.s32.totalorder %s25, 3
      %s27 = scalar_select %p26, 0, %s25
      %s28 = ssub.s32 %s15, %s27
      %s29 = ssub.s32 %s16, %s23
      %s30 = sor.u32 %s28, %s29
      %p31 = scmp.eq.s32.totalorder %s30, 0
      %s33 = sadd.s32 %s32, 1
      %s34 = scalar_select %p31, %s32, %s33
      %p37 = pneg %p31
      %p38 = scmp.eq.s32.totalorder %s8, 2
      %p39 = por %p37, %p38
      %p40 = scmp.ne.s32.totalorder %s32, %s35
      %p41 = scmp.eq.s32.totalorder %s8, 0
      %p42 = por %p40, %p41
      %p43 = scmp.ne.s32.totalorder %s32, %s35
      %p44 = scmp.eq.s32.totalorder %s13, 2
      %p45 = por %p43, %p44
      %p46 = scmp.ne.s32.totalorder %s35, %s36
      %p47 = scmp.eq.s32.totalorder %s13, 0
      %p48 = por %p46, %p47
      %p49 = scmp.ne.s32.totalorder %s35, %s36
      %p50 = scmp.eq.s32.totalorder %s14, 2
      %p51 = por %p49, %p50
      %p53 = scmp.ne.s32.totalorder %s36, %s52
      %p54 = scmp.eq.s32.totalorder %s14, 0
      %p55 = por %p53, %p54
      %s56 = ssub.s32 %s15, %s27
      %s57 = ssub.s32 %s16, %s23
      %s58 = sor.u32 %s56, %s57
      %p59 = scmp.eq.s32.totalorder %s58, 0
      %s61 = sadd.s32 %s60, 1
      %s62 = scalar_select %p59, %s60, %s61
      %p65 = pneg %p59
      %p66 = scmp.eq.s32.totalorder %s8, 2
      %p67 = por %p65, %p66
      %p68 = scmp.ne.s32.totalorder %s60, %s63
      %p69 = scmp.eq.s32.totalorder %s8, 0
      %p70 = por %p68, %p69
      %p71 = scmp.ne.s32.totalorder %s60, %s63
      %p72 = scmp.eq.s32.totalorder %s13, 2
      %p73 = por %p71, %p72
      %p74 = scmp.ne.s32.totalorder %s63, %s64
      %p75 = scmp.eq.s32.totalorder %s13, 0
      %p76 = por %p74, %p75
      %p77 = scmp.ne.s32.totalorder %s63, %s64
      %p78 = scmp.eq.s32.totalorder %s14, 2
      %p79 = por %p77, %p78
      %p81 = scmp.ne.s32.totalorder %s64, %s80
      %p82 = scmp.eq.s32.totalorder %s14, 0
      %p83 = por %p81, %p82
      %s84 = ssub.s32 %s15, %s27
      %s85 = ssub.s32 %s16, %s23
      %s86 = sor.u32 %s84, %s85
      %p87 = scmp.eq.s32.totalorder %s86, 0
      %s89 = sadd.s32 %s88, 1
      %s90 = scalar_select %p87, %s88, %s89
      %p93 = pneg %p87
      %p94 = scmp.eq.s32.totalorder %s8, 2
      %p95 = por %p93, %p94
      %p96 = scmp.ne.s32.totalorder %s88, %s91
      %p97 = scmp.eq.s32.totalorder %s8, 0
      %p98 = por %p96, %p97
      %p99 = scmp.ne.s32.totalorder %s88, %s91
      %p100 = scmp.eq.s32.totalorder %s13, 2
      %p101 = por %p99, %p100
      %p102 = scmp.ne.s32.totalorder %s91, %s92
      %p103 = scmp.eq.s32.totalorder %s13, 0
      %p104 = por %p102, %p103
      %p105 = scmp.ne.s32.totalorder %s91, %s92
      %p106 = scmp.eq.s32.totalorder %s14, 2
      %p107 = por %p105, %p106
      %p109 = scmp.ne.s32.totalorder %s92, %s108
      %p110 = scmp.eq.s32.totalorder %s14, 0
      %p111 = por %p109, %p110
      %p112 = scmp.le.s32.totalorder 1, %s8
      %p113 = scmp.lt.s32.totalorder %s8, 4
      %p114 = pnand %p112, %p113
      %p115 = pneg %p114
      // Predicated region
      $region9: #{tpu_custom_call.1} parent=5 // pred_check
        _
      $region10: #{tpu_custom_call.1} parent=5 // pred_check_branch
        %117 = sbr.rel (%p114) target = $region12
      $region11: #{tpu_custom_call.1} parent=5 // pred_region
        %s118 = ssub.s32 %s8, 1
      $region12: #{tpu_custom_call.1} parent=5 // pred_fallthru
        _
      %p119 = scmp.lt.s32.totalorder %s8, 3
      // Predicated region
      $region13: #{tpu_custom_call.1} parent=5 // pred_check
        %p120 = pneg %p119
      $region14: #{tpu_custom_call.1} parent=5 // pred_check_branch
        %122 = sbr.rel (%p120) target = $region16
      $region15: #{tpu_custom_call.1} parent=5 // pred_region
        // Predicated region
        $region17: #{tpu_custom_call.1} parent=15 // pred_check
          %p123 = pneg %p42
        $region18: #{tpu_custom_call.1} parent=15 // pred_check_branch
          %125 = sbr.rel (%p123) target = $region20
        $region19: #{tpu_custom_call.1} parent=15 // pred_region
          %s126 = smul.u32 31, %s15
          %s127 = ssub.s32 63, %s126
          %p128 = scmp.lt.s32.totalorder %s127, 31
          %s129 = scalar_select %p128, %s127, 31
          %s130 = smul.u32 128, %s129
          %p131 = scmp.lt.s32.totalorder %s126, 62
          %s132 = scalar_select %p131, %s126, 62
          %p133 = scmp.lt.s32.totalorder %s16, 0
          %s134 = scalar_select %p133, %s16, 0
          %s135 = sadd.s32 %s134, %s132
          %s136 = smul.addr %s135, 8
          %s137 = scalar_lea.vmem %s0, %s136
          %s138 = smul.u32 31, %s15
          %s139 = ssub.s32 63, %s138
          %p140 = scmp.lt.s32.totalorder %s139, 31
          %s141 = scalar_select %p140, %s139, 31
          %s142 = smul.u32 128, %s141
        $region20: #{tpu_custom_call.1} parent=15 // pred_fallthru
          _
        // Predicated region
        $region21: #{tpu_custom_call.1} parent=15 // pred_check
          %p143 = pneg %p70
        $region22: #{tpu_custom_call.1} parent=15 // pred_check_branch
          %145 = sbr.rel (%p143) target = $region24
        $region23: #{tpu_custom_call.1} parent=15 // pred_region
          %s146 = smul.u32 31, %s15
          %s147 = ssub.s32 63, %s146
          %p148 = scmp.lt.s32.totalorder %s147, 31
          %s149 = scalar_select %p148, %s147, 31
          %s150 = smul.u32 128, %s149
          %p151 = scmp.lt.s32.totalorder %s146, 62
          %s152 = scalar_select %p151, %s146, 62
          %p153 = scmp.lt.s32.totalorder %s16, 0
          %s154 = scalar_select %p153, %s16, 0
          %s155 = sadd.s32 %s154, %s152
          %s156 = smul.addr %s155, 8
          %s157 = scalar_lea.vmem %s1, %s156
          %s158 = smul.u32 31, %s15
          %s159 = ssub.s32 63, %s158
          %p160 = scmp.lt.s32.totalorder %s159, 31
          %s161 = scalar_select %p160, %s159, 31
          %s162 = smul.u32 128, %s161
        $region24: #{tpu_custom_call.1} parent=15 // pred_fallthru
          _
      $region16: #{tpu_custom_call.1} parent=5 // pred_fallthru
        _
      %p163 = scmp.le.s32.totalorder 1, %s8
      %p164 = scmp.lt.s32.totalorder %s8, 4
      %p165 = pnand %p163, %p164
      %p166 = pneg %p165
      // Predicated region
      $region25: #{tpu_custom_call.1} parent=5 // pred_check
        _
      $region26: #{tpu_custom_call.1} parent=5 // pred_check_branch
        %168 = sbr.rel (%p165) target = $region28
      $region27: #{tpu_custom_call.1} parent=5 // pred_region
        %s169 = ssub.s32 %s8, 1
        %s170 = smul.u32 31, %s17
        %s171 = ssub.s32 63, %s170
        %p172 = scmp.lt.s32.totalorder %s171, 31
        %s173 = scalar_select %p172, %s171, 31
        %s174 = smul.u32 128, %s173
        %p175 = scmp.lt.s32.totalorder %s170, 62
        %s176 = scalar_select %p175, %s170, 62
        %p177 = scmp.lt.s32.totalorder %s18, 0
        %s178 = scalar_select %p177, %s18, 0
        %s179 = sadd.s32 %s178, %s176
        %s180 = smul.addr %s179, 8
        %s181 = scalar_lea.vmem %s0, %s180
        %p182 = pneg %p48
        %p183 = pneg %p45
        %s184 = smul.u32 31, %s17
        %s185 = ssub.s32 63, %s184
        %p186 = scmp.lt.s32.totalorder %s185, 31
        %s187 = scalar_select %p186, %s185, 31
        %s188 = smul.u32 128, %s187
        %p189 = scmp.lt.s32.totalorder %s184, 62
        %s190 = scalar_select %p189, %s184, 62
        %p191 = scmp.lt.s32.totalorder %s18, 0
        %s192 = scalar_select %p191, %s18, 0
        %s193 = sadd.s32 %s192, %s190
        %s194 = smul.addr %s193, 8
        %s195 = scalar_lea.vmem %s1, %s194
        %p196 = pneg %p76
        %p197 = pneg %p73
        %p198 = pneg %p104
        %p199 = pneg %p101
        %s200 = sand.u32 %s91, 1
        %s201 = sand.u32 %s91, 1
        %s202 = smul.addr %s201, 248
        %s203 = scalar_lea.vmem [#allocation2], %s202
        %s204 = smul.u32 31, %s17
        %s205 = ssub.s32 63, %s204
        %p206 = scmp.lt.s32.totalorder %s205, 31
        %s207 = scalar_select %p206, %s205, 31
        %s208 = smul.u32 128, %s207
        %p209 = scmp.lt.s32.totalorder %s204, 62
        %s210 = scalar_select %p209, %s204, 62
        %p211 = scmp.lt.s32.totalorder %s18, 0
        %s212 = scalar_select %p211, %s18, 0
        %s213 = sadd.s32 %s212, %s210
        %s214 = smul.addr %s213, 8
        %s215 = scalar_lea.vmem %s0, %s214
        %s216 = smul.u32 31, %s17
        %s217 = ssub.s32 63, %s216
        %p218 = scmp.lt.s32.totalorder %s217, 31
        %s219 = scalar_select %p218, %s217, 31
        %s220 = smul.u32 128, %s219
        %s221 = smul.u32 31, %s17
        %s222 = ssub.s32 63, %s221
        %p223 = scmp.lt.s32.totalorder %s222, 31
        %s224 = scalar_select %p223, %s222, 31
        %s225 = smul.u32 128, %s224
        %p226 = scmp.lt.s32.totalorder %s221, 62
        %s227 = scalar_select %p226, %s221, 62
        %p228 = scmp.lt.s32.totalorder %s18, 0
        %s229 = scalar_select %p228, %s18, 0
        %s230 = sadd.s32 %s229, %s227
        %s231 = smul.addr %s230, 8
        %s232 = scalar_lea.vmem %s1, %s231
        %s233 = smul.u32 31, %s17
        %s234 = ssub.s32 63, %s233
        %p235 = scmp.lt.s32.totalorder %s234, 31
        %s236 = scalar_select %p235, %s234, 31
        %s237 = smul.u32 128, %s236
        %s238 = smul.u32 31, %s17
        %s239 = ssub.s32 63, %s238
        %p240 = scmp.lt.s32.totalorder %s239, 31
        %s241 = scalar_select %p240, %s239, 31
        %s242 = smul.u32 128, %s241
        %v243 = vld [vmem:[%s215] sm:$0xff]
        %v244 = vld [vmem:[%s215 + $0x8] sm:$0xff]
        %v245 = vld [vmem:[%s215 + $0x10] sm:$0xff]
        %v246 = vld [vmem:[%s215 + $0x18] sm:$0xff]
        %v247 = vld [vmem:[%s215 + $0x20] sm:$0xff]
        %v248 = vld [vmem:[%s215 + $0x28] sm:$0xff]
        %v249 = vld [vmem:[%s215 + $0x30] sm:$0xff]
        %v250 = vld [vmem:[%s215 + $0x38] sm:$0xff]
        %v251 = vld [vmem:[%s215 + $0x40] sm:$0xff]
        %v252 = vld [vmem:[%s215 + $0x48] sm:$0xff]
        %v253 = vld [vmem:[%s215 + $0x50] sm:$0xff]
        %v254 = vld [vmem:[%s215 + $0x58] sm:$0xff]
        %v255 = vld [vmem:[%s215 + $0x60] sm:$0xff]
        %v256 = vld [vmem:[%s215 + $0x68] sm:$0xff]
        %v257 = vld [vmem:[%s215 + $0x70] sm:$0xff]
        %v258 = vld [vmem:[%s215 + $0x78] sm:$0xff]
        %v259 = vld [vmem:[%s215 + $0x80] sm:$0xff]
        %v260 = vld [vmem:[%s215 + $0x88] sm:$0xff]
        %v261 = vld [vmem:[%s215 + $0x90] sm:$0xff]
        %v262 = vld [vmem:[%s215 + $0x98] sm:$0xff]
        %v263 = vld [vmem:[%s215 + $0xa0] sm:$0xff]
        %v264 = vld [vmem:[%s215 + $0xa8] sm:$0xff]
        %v265 = vld [vmem:[%s215 + $0xb0] sm:$0xff]
        %v266 = vld [vmem:[%s215 + $0xb8] sm:$0xff]
        %v267 = vld [vmem:[%s215 + $0xc0] sm:$0xff]
        %v268 = vld [vmem:[%s215 + $0xc8] sm:$0xff]
        %v269 = vld [vmem:[%s215 + $0xd0] sm:$0xff]
        %v270 = vld [vmem:[%s215 + $0xd8] sm:$0xff]
        %v271 = vld [vmem:[%s215 + $0xe0] sm:$0xff]
        %v272 = vld [vmem:[%s215 + $0xe8] sm:$0xff]
        %v273 = vld [vmem:[%s215 + $0xf0] sm:$0xff]
        %v274 = vld [vmem:[%s232] sm:$0xff]
        %v275 = vld [vmem:[%s232 + $0x8] sm:$0xff]
        %v276 = vld [vmem:[%s232 + $0x10] sm:$0xff]
        %v277 = vld [vmem:[%s232 + $0x18] sm:$0xff]
        %v278 = vld [vmem:[%s232 + $0x20] sm:$0xff]
        %v279 = vld [vmem:[%s232 + $0x28] sm:$0xff]
        %v280 = vld [vmem:[%s232 + $0x30] sm:$0xff]
        %v281 = vld [vmem:[%s232 + $0x38] sm:$0xff]
        %v282 = vld [vmem:[%s232 + $0x40] sm:$0xff]
        %v283 = vld [vmem:[%s232 + $0x48] sm:$0xff]
        %v284 = vld [vmem:[%s232 + $0x50] sm:$0xff]
        %v285 = vld [vmem:[%s232 + $0x58] sm:$0xff]
        %v286 = vld [vmem:[%s232 + $0x60] sm:$0xff]
        %v287 = vld [vmem:[%s232 + $0x68] sm:$0xff]
        %v288 = vld [vmem:[%s232 + $0x70] sm:$0xff]
        %v289 = vld [vmem:[%s232 + $0x78] sm:$0xff]
        %v290 = vld [vmem:[%s232 + $0x80] sm:$0xff]
        %v291 = vld [vmem:[%s232 + $0x88] sm:$0xff]
        %v292 = vld [vmem:[%s232 + $0x90] sm:$0xff]
        %v293 = vld [vmem:[%s232 + $0x98] sm:$0xff]
        %v294 = vld [vmem:[%s232 + $0xa0] sm:$0xff]
        %v295 = vld [vmem:[%s232 + $0xa8] sm:$0xff]
        %v296 = vld [vmem:[%s232 + $0xb0] sm:$0xff]
        %v297 = vld [vmem:[%s232 + $0xb8] sm:$0xff]
        %v298 = vld [vmem:[%s232 + $0xc0] sm:$0xff]
        %v299 = vld [vmem:[%s232 + $0xc8] sm:$0xff]
        %v300 = vld [vmem:[%s232 + $0xd0] sm:$0xff]
        %v301 = vld [vmem:[%s232 + $0xd8] sm:$0xff]
        %v302 = vld [vmem:[%s232 + $0xe0] sm:$0xff]
        %v303 = vld [vmem:[%s232 + $0xe8] sm:$0xff]
        %v304 = vld [vmem:[%s232 + $0xf0] sm:$0xff]
        %v305 = vadd.f32 %v243, %v274
        %v306 = vadd.f32 %v244, %v275
        %v307 = vadd.f32 %v245, %v276
        %v308 = vadd.f32 %v246, %v277
        %v309 = vadd.f32 %v247, %v278
        %v310 = vadd.f32 %v248, %v279
        %v311 = vadd.f32 %v249, %v280
        %v312 = vadd.f32 %v250, %v281
        %v313 = vadd.f32 %v251, %v282
        %v314 = vadd.f32 %v252, %v283
        %v315 = vadd.f32 %v253, %v284
        %v316 = vadd.f32 %v254, %v285
        %v317 = vadd.f32 %v255, %v286
        %v318 = vadd.f32 %v256, %v287
        %v319 = vadd.f32 %v257, %v288
        %v320 = vadd.f32 %v258, %v289
        %v321 = vadd.f32 %v259, %v290
        %v322 = vadd.f32 %v260, %v291
        %v323 = vadd.f32 %v261, %v292
        %v324 = vadd.f32 %v262, %v293
        %v325 = vadd.f32 %v263, %v294
        %v326 = vadd.f32 %v264, %v295
        %v327 = vadd.f32 %v265, %v296
        %v328 = vadd.f32 %v266, %v297
        %v329 = vadd.f32 %v267, %v298
        %v330 = vadd.f32 %v268, %v299
        %v331 = vadd.f32 %v269, %v300
        %v332 = vadd.f32 %v270, %v301
        %v333 = vadd.f32 %v271, %v302
        %v334 = vadd.f32 %v272, %v303
        %v335 = vadd.f32 %v273, %v304
        %vm336 = vcmask 498688
        %337 = vst.msk [vmem:[%s203] sm:$0xff] %vm336, %v305
        %338 = vst.msk [vmem:[%s203 + $0x8] sm:$0xff] %vm336, %v306
        %339 = vst.msk [vmem:[%s203 + $0x10] sm:$0xff] %vm336, %v307
        %340 = vst.msk [vmem:[%s203 + $0x18] sm:$0xff] %vm336, %v308
        %341 = vst.msk [vmem:[%s203 + $0x20] sm:$0xff] %vm336, %v309
        %342 = vst.msk [vmem:[%s203 + $0x28] sm:$0xff] %vm336, %v310
        %343 = vst.msk [vmem:[%s203 + $0x30] sm:$0xff] %vm336, %v311
        %344 = vst.msk [vmem:[%s203 + $0x38] sm:$0xff] %vm336, %v312
        %345 = vst.msk [vmem:[%s203 + $0x40] sm:$0xff] %vm336, %v313
        %346 = vst.msk [vmem:[%s203 + $0x48] sm:$0xff] %vm336, %v314
        %347 = vst.msk [vmem:[%s203 + $0x50] sm:$0xff] %vm336, %v315
        %348 = vst.msk [vmem:[%s203 + $0x58] sm:$0xff] %vm336, %v316
        %349 = vst.msk [vmem:[%s203 + $0x60] sm:$0xff] %vm336, %v317
        %350 = vst.msk [vmem:[%s203 + $0x68] sm:$0xff] %vm336, %v318
        %351 = vst.msk [vmem:[%s203 + $0x70] sm:$0xff] %vm336, %v319
        %352 = vst.msk [vmem:[%s203 + $0x78] sm:$0xff] %vm336, %v320
        %353 = vst.msk [vmem:[%s203 + $0x80] sm:$0xff] %vm336, %v321
        %354 = vst.msk [vmem:[%s203 + $0x88] sm:$0xff] %vm336, %v322
        %355 = vst.msk [vmem:[%s203 + $0x90] sm:$0xff] %vm336, %v323
        %356 = vst.msk [vmem:[%s203 + $0x98] sm:$0xff] %vm336, %v324
        %357 = vst.msk [vmem:[%s203 + $0xa0] sm:$0xff] %vm336, %v325
        %358 = vst.msk [vmem:[%s203 + $0xa8] sm:$0xff] %vm336, %v326
        %359 = vst.msk [vmem:[%s203 + $0xb0] sm:$0xff] %vm336, %v327
        %360 = vst.msk [vmem:[%s203 + $0xb8] sm:$0xff] %vm336, %v328
        %361 = vst.msk [vmem:[%s203 + $0xc0] sm:$0xff] %vm336, %v329
        %362 = vst.msk [vmem:[%s203 + $0xc8] sm:$0xff] %vm336, %v330
        %363 = vst.msk [vmem:[%s203 + $0xd0] sm:$0xff] %vm336, %v331
        %364 = vst.msk [vmem:[%s203 + $0xd8] sm:$0xff] %vm336, %v332
        %365 = vst.msk [vmem:[%s203 + $0xe0] sm:$0xff] %vm336, %v333
        %366 = vst.msk [vmem:[%s203 + $0xe8] sm:$0xff] %vm336, %v334
        %367 = vst.msk [vmem:[%s203 + $0xf0] sm:$0xff] %vm336, %v335
        %s368 = sand.u32 %s91, 1
        %s369 = sand.u32 %s91, 1
        %s370 = smul.addr %s369, 248
        %s371 = scalar_lea.vmem [#allocation2], %s370
        // Predicated region
        $region29: #{tpu_custom_call.1} parent=27 // pred_check
          %p372 = pneg %p101
        $region30: #{tpu_custom_call.1} parent=27 // pred_check_branch
          %374 = sbr.rel (%p372) target = $region32
        $region31: #{tpu_custom_call.1} parent=27 // pred_region
          %s375 = smul.u32 31, %s17
          %s376 = ssub.s32 63, %s375
          %p377 = scmp.lt.s32.totalorder %s376, 31
          %s378 = scalar_select %p377, %s376, 31
          %s379 = smul.u32 128, %s378
          %p380 = scmp.ne.s32.totalorder 0, %s379
          %s381 = sadd.s32 %s18, %s375
          %s382 = smul.addr %s381, 8
          %s383 = scalar_lea.vmem %s2, %s382
          // Predicated region
          $region33: #{tpu_custom_call.1} parent=31 // pred_check
            %p384 = pneg %p380
          $region34: #{tpu_custom_call.1} parent=31 // pred_check_branch
            %386 = sbr.rel (%p384) target = $region36
          $region35: #{tpu_custom_call.1} parent=31 // pred_region
            // Predicated region
            $region37: #{tpu_custom_call.1} parent=35 // pred_check
              _
            $region38: #{tpu_custom_call.1} parent=35 // pred_check_branch
              %388 = sbr.rel (0) target = $region40
            $region39: #{tpu_custom_call.1} parent=35 // pred_region
              // Predicated region
              $region59: #{tpu_custom_call.1} parent=39 // pred_check
                _
              $region60: #{tpu_custom_call.1} parent=39 // pred_check_branch
                %498 = sbr.rel (0) target = $region62
              $region61: #{tpu_custom_call.1} parent=39 // pred_region
                %s499 = sdiv.u32.pop %s378, 31
                %s500 = srem.u32.pop %s378, 31
                // While loop
                $region63: #{tpu_custom_call.1} parent=61 // loop_pre_header
                  _
                $region64: #{tpu_custom_call.1} parent=61 // loop_header
                  %s502 = sphi 0, %s504
                  %p503 = scmp.ge.s32.totalorder %s502, %s499
                  %s507 = sphi 0, %s574
                  %s508 = sphi %s371, %s577
                  %s509 = sphi %s383, %s578
                $region65: #{tpu_custom_call.1} parent=61 // loop_header_branch
                  %506 = sbr.rel (%p503) target = $region69
                $region66: #{tpu_custom_call.1} parent=61 // loop_body
                  %v510 = vld [vmem:[%s508] sm:$0xff]
                  %511 = vst [vmem:[%s509] sm:$0xff] %v510
                  %v512 = vld [vmem:[%s508 + $0x8] sm:$0xff]
                  %513 = vst [vmem:[%s509 + $0x8] sm:$0xff] %v512
                  %v514 = vld [vmem:[%s508 + $0x10] sm:$0xff]
                  %515 = vst [vmem:[%s509 + $0x10] sm:$0xff] %v514
                  %v516 = vld [vmem:[%s508 + $0x18] sm:$0xff]
                  %517 = vst [vmem:[%s509 + $0x18] sm:$0xff] %v516
                  %v518 = vld [vmem:[%s508 + $0x20] sm:$0xff]
                  %519 = vst [vmem:[%s509 + $0x20] sm:$0xff] %v518
                  %v520 = vld [vmem:[%s508 + $0x28] sm:$0xff]
                  %521 = vst [vmem:[%s509 + $0x28] sm:$0xff] %v520
                  %v522 = vld [vmem:[%s508 + $0x30] sm:$0xff]
                  %523 = vst [vmem:[%s509 + $0x30] sm:$0xff] %v522
                  %v524 = vld [vmem:[%s508 + $0x38] sm:$0xff]
                  %525 = vst [vmem:[%s509 + $0x38] sm:$0xff] %v524
                  %v526 = vld [vmem:[%s508 + $0x40] sm:$0xff]
                  %527 = vst [vmem:[%s509 + $0x40] sm:$0xff] %v526
                  %v528 = vld [vmem:[%s508 + $0x48] sm:$0xff]
                  %529 = vst [vmem:[%s509 + $0x48] sm:$0xff] %v528
                  %v530 = vld [vmem:[%s508 + $0x50] sm:$0xff]
                  %531 = vst [vmem:[%s509 + $0x50] sm:$0xff] %v530
                  %v532 = vld [vmem:[%s508 + $0x58] sm:$0xff]
                  %533 = vst [vmem:[%s509 + $0x58] sm:$0xff] %v532
                  %v534 = vld [vmem:[%s508 + $0x60] sm:$0xff]
                  %535 = vst [vmem:[%s509 + $0x60] sm:$0xff] %v534
                  %v536 = vld [vmem:[%s508 + $0x68] sm:$0xff]
                  %537 = vst [vmem:[%s509 + $0x68] sm:$0xff] %v536
                  %v538 = vld [vmem:[%s508 + $0x70] sm:$0xff]
                  %539 = vst [vmem:[%s509 + $0x70] sm:$0xff] %v538
                  %v540 = vld [vmem:[%s508 + $0x78] sm:$0xff]
                  %541 = vst [vmem:[%s509 + $0x78] sm:$0xff] %v540
                  %v542 = vld [vmem:[%s508 + $0x80] sm:$0xff]
                  %543 = vst [vmem:[%s509 + $0x80] sm:$0xff] %v542
                  %v544 = vld [vmem:[%s508 + $0x88] sm:$0xff]
                  %545 = vst [vmem:[%s509 + $0x88] sm:$0xff] %v544
                  %v546 = vld [vmem:[%s508 + $0x90] sm:$0xff]
                  %547 = vst [vmem:[%s509 + $0x90] sm:$0xff] %v546
                  %v548 = vld [vmem:[%s508 + $0x98] sm:$0xff]
                  %549 = vst [vmem:[%s509 + $0x98] sm:$0xff] %v548
                  %v550 = vld [vmem:[%s508 + $0xa0] sm:$0xff]
                  %551 = vst [vmem:[%s509 + $0xa0] sm:$0xff] %v550
                  %v552 = vld [vmem:[%s508 + $0xa8] sm:$0xff]
                  %553 = vst [vmem:[%s509 + $0xa8] sm:$0xff] %v552
                  %v554 = vld [vmem:[%s508 + $0xb0] sm:$0xff]
                  %555 = vst [vmem:[%s509 + $0xb0] sm:$0xff] %v554
                  %v556 = vld [vmem:[%s508 + $0xb8] sm:$0xff]
                  %557 = vst [vmem:[%s509 + $0xb8] sm:$0xff] %v556
                  %v558 = vld [vmem:[%s508 + $0xc0] sm:$0xff]
                  %559 = vst [vmem:[%s509 + $0xc0] sm:$0xff] %v558
                  %v560 = vld [vmem:[%s508 + $0xc8] sm:$0xff]
                  %561 = vst [vmem:[%s509 + $0xc8] sm:$0xff] %v560
                  %v562 = vld [vmem:[%s508 + $0xd0] sm:$0xff]
                  %563 = vst [vmem:[%s509 + $0xd0] sm:$0xff] %v562
                  %v564 = vld [vmem:[%s508 + $0xd8] sm:$0xff]
                  %565 = vst [vmem:[%s509 + $0xd8] sm:$0xff] %v564
                  %v566 = vld [vmem:[%s508 + $0xe0] sm:$0xff]
                  %567 = vst [vmem:[%s509 + $0xe0] sm:$0xff] %v566
                  %v568 = vld [vmem:[%s508 + $0xe8] sm:$0xff]
                  %569 = vst [vmem:[%s509 + $0xe8] sm:$0xff] %v568
                  %v570 = vld [vmem:[%s508 + $0xf0] sm:$0xff]
                  %571 = vst [vmem:[%s509 + $0xf0] sm:$0xff] %v570
                  %s572 = sadd.s32 1, %s507
                  %p573 = scmp.ge.s32.totalorder %s572, %s499
                  %s574 = scalar_select %p573, 0, %s572
                  %s575 = smul.u32 %s574, 248
                  %s576 = smul.u32 %s574, 248
                  %s577 = scalar_lea.vmem %s371, %s575 [#allocation2]
                  %s578 = scalar_lea.vmem %s383, %s576
                $region67: #{tpu_custom_call.1} parent=61 // loop_footer
                  %s504 = sadd.s32 %s502, 1
                $region68: #{tpu_custom_call.1} parent=61 // loop_footer_branch
                  %501 = sbr.rel target = $region64
                $region69: #{tpu_custom_call.1} parent=61 // loop_exit
                  _
                %s579 = sdiv.u32.pop %s378, 31
                %s580 = srem.u32.pop %s378, 31
                %s581 = smul.u32 %s579, 31
                %s582 = smul.u32 8, %s581
                %s583 = scalar_lea.vmem %s371, %s582 [#allocation2]
                %s584 = smul.u32 8, %s581
                %s585 = scalar_lea.vmem %s383, %s584
                // While loop
                $region70: #{tpu_custom_call.1} parent=61 // loop_pre_header
                  _
                $region71: #{tpu_custom_call.1} parent=61 // loop_header
                  %s587 = sphi 0, %s589
                  %p588 = scmp.ge.s32.totalorder %s587, %s580
                  %s592 = sphi 0, %s599
                  %s593 = sphi %s583, %s602
                  %s594 = sphi %s585, %s603
                $region72: #{tpu_custom_call.1} parent=61 // loop_header_branch
                  %591 = sbr.rel (%p588) target = $region76
                $region73: #{tpu_custom_call.1} parent=61 // loop_body
                  %v595 = vld [vmem:[%s593] sm:$0xff]
                  %596 = vst [vmem:[%s594] sm:$0xff] %v595
                  %s597 = sadd.s32 1, %s592
                  %p598 = scmp.ge.s32.totalorder %s597, %s580
                  %s599 = scalar_select %p598, 0, %s597
                  %s600 = smul.u32 %s599, 8
                  %s601 = smul.u32 %s599, 8
                  %s602 = scalar_lea.vmem %s583, %s600 [#allocation2]
                  %s603 = scalar_lea.vmem %s585, %s601
                $region74: #{tpu_custom_call.1} parent=61 // loop_footer
                  %s589 = sadd.s32 %s587, 1
                $region75: #{tpu_custom_call.1} parent=61 // loop_footer_branch
                  %586 = sbr.rel target = $region71
                $region76: #{tpu_custom_call.1} parent=61 // loop_exit
                  _
              $region62: #{tpu_custom_call.1} parent=39 // pred_fallthru
                _
              // Predicated region
              $region77: #{tpu_custom_call.1} parent=39 // pred_check
                _
              $region78: #{tpu_custom_call.1} parent=39 // pred_check_branch
                %605 = sbr.rel target = $region80
              $region79: #{tpu_custom_call.1} parent=39 // pred_region
                _
              $region80: #{tpu_custom_call.1} parent=39 // pred_fallthru
                _
            $region40: #{tpu_custom_call.1} parent=35 // pred_fallthru
              _
            // Predicated region
            $region41: #{tpu_custom_call.1} parent=35 // pred_check
              _
            $region42: #{tpu_custom_call.1} parent=35 // pred_check_branch
              %390 = sbr.rel target = $region44
            $region43: #{tpu_custom_call.1} parent=35 // pred_region
              %s392 = sdiv.u32.pop %s378, 31
              %s393 = srem.u32.pop %s378, 31
              // While loop
              $region45: #{tpu_custom_call.1} parent=43 // loop_pre_header
                _
              $region46: #{tpu_custom_call.1} parent=43 // loop_header
                %s395 = sphi 0, %s397
                %p396 = scmp.ge.s32.totalorder %s395, %s392
                %s400 = sphi 0, %s467
                %s401 = sphi %s371, %s470
                %s402 = sphi %s383, %s471
              $region47: #{tpu_custom_call.1} parent=43 // loop_header_branch
                %399 = sbr.rel (%p396) target = $region51
              $region48: #{tpu_custom_call.1} parent=43 // loop_body
                %v403 = vld [vmem:[%s401] sm:$0xff]
                %404 = vst [vmem:[%s402] sm:$0xff] %v403
                %v405 = vld [vmem:[%s401 + $0x8] sm:$0xff]
                %406 = vst [vmem:[%s402 + $0x8] sm:$0xff] %v405
                %v407 = vld [vmem:[%s401 + $0x10] sm:$0xff]
                %408 = vst [vmem:[%s402 + $0x10] sm:$0xff] %v407
                %v409 = vld [vmem:[%s401 + $0x18] sm:$0xff]
                %410 = vst [vmem:[%s402 + $0x18] sm:$0xff] %v409
                %v411 = vld [vmem:[%s401 + $0x20] sm:$0xff]
                %412 = vst [vmem:[%s402 + $0x20] sm:$0xff] %v411
                %v413 = vld [vmem:[%s401 + $0x28] sm:$0xff]
                %414 = vst [vmem:[%s402 + $0x28] sm:$0xff] %v413
                %v415 = vld [vmem:[%s401 + $0x30] sm:$0xff]
                %416 = vst [vmem:[%s402 + $0x30] sm:$0xff] %v415
                %v417 = vld [vmem:[%s401 + $0x38] sm:$0xff]
                %418 = vst [vmem:[%s402 + $0x38] sm:$0xff] %v417
                %v419 = vld [vmem:[%s401 + $0x40] sm:$0xff]
                %420 = vst [vmem:[%s402 + $0x40] sm:$0xff] %v419
                %v421 = vld [vmem:[%s401 + $0x48] sm:$0xff]
                %422 = vst [vmem:[%s402 + $0x48] sm:$0xff] %v421
                %v423 = vld [vmem:[%s401 + $0x50] sm:$0xff]
                %424 = vst [vmem:[%s402 + $0x50] sm:$0xff] %v423
                %v425 = vld [vmem:[%s401 + $0x58] sm:$0xff]
                %426 = vst [vmem:[%s402 + $0x58] sm:$0xff] %v425
                %v427 = vld [vmem:[%s401 + $0x60] sm:$0xff]
                %428 = vst [vmem:[%s402 + $0x60] sm:$0xff] %v427
                %v429 = vld [vmem:[%s401 + $0x68] sm:$0xff]
                %430 = vst [vmem:[%s402 + $0x68] sm:$0xff] %v429
                %v431 = vld [vmem:[%s401 + $0x70] sm:$0xff]
                %432 = vst [vmem:[%s402 + $0x70] sm:$0xff] %v431
                %v433 = vld [vmem:[%s401 + $0x78] sm:$0xff]
                %434 = vst [vmem:[%s402 + $0x78] sm:$0xff] %v433
                %v435 = vld [vmem:[%s401 + $0x80] sm:$0xff]
                %436 = vst [vmem:[%s402 + $0x80] sm:$0xff] %v435
                %v437 = vld [vmem:[%s401 + $0x88] sm:$0xff]
                %438 = vst [vmem:[%s402 + $0x88] sm:$0xff] %v437
                %v439 = vld [vmem:[%s401 + $0x90] sm:$0xff]
                %440 = vst [vmem:[%s402 + $0x90] sm:$0xff] %v439
                %v441 = vld [vmem:[%s401 + $0x98] sm:$0xff]
                %442 = vst [vmem:[%s402 + $0x98] sm:$0xff] %v441
                %v443 = vld [vmem:[%s401 + $0xa0] sm:$0xff]
                %444 = vst [vmem:[%s402 + $0xa0] sm:$0xff] %v443
                %v445 = vld [vmem:[%s401 + $0xa8] sm:$0xff]
                %446 = vst [vmem:[%s402 + $0xa8] sm:$0xff] %v445
                %v447 = vld [vmem:[%s401 + $0xb0] sm:$0xff]
                %448 = vst [vmem:[%s402 + $0xb0] sm:$0xff] %v447
                %v449 = vld [vmem:[%s401 + $0xb8] sm:$0xff]
                %450 = vst [vmem:[%s402 + $0xb8] sm:$0xff] %v449
                %v451 = vld [vmem:[%s401 + $0xc0] sm:$0xff]
                %452 = vst [vmem:[%s402 + $0xc0] sm:$0xff] %v451
                %v453 = vld [vmem:[%s401 + $0xc8] sm:$0xff]
                %454 = vst [vmem:[%s402 + $0xc8] sm:$0xff] %v453
                %v455 = vld [vmem:[%s401 + $0xd0] sm:$0xff]
                %456 = vst [vmem:[%s402 + $0xd0] sm:$0xff] %v455
                %v457 = vld [vmem:[%s401 + $0xd8] sm:$0xff]
                %458 = vst [vmem:[%s402 + $0xd8] sm:$0xff] %v457
                %v459 = vld [vmem:[%s401 + $0xe0] sm:$0xff]
                %460 = vst [vmem:[%s402 + $0xe0] sm:$0xff] %v459
                %v461 = vld [vmem:[%s401 + $0xe8] sm:$0xff]
                %462 = vst [vmem:[%s402 + $0xe8] sm:$0xff] %v461
                %v463 = vld [vmem:[%s401 + $0xf0] sm:$0xff]
                %464 = vst [vmem:[%s402 + $0xf0] sm:$0xff] %v463
                %s465 = sadd.s32 1, %s400
                %p466 = scmp.ge.s32.totalorder %s465, %s392
                %s467 = scalar_select %p466, 0, %s465
                %s468 = smul.u32 %s467, 248
                %s469 = smul.u32 %s467, 248
                %s470 = scalar_lea.vmem %s371, %s468 [#allocation2]
                %s471 = scalar_lea.vmem %s383, %s469
              $region49: #{tpu_custom_call.1} parent=43 // loop_footer
                %s397 = sadd.s32 %s395, 1
              $region50: #{tpu_custom_call.1} parent=43 // loop_footer_branch
                %394 = sbr.rel target = $region46
              $region51: #{tpu_custom_call.1} parent=43 // loop_exit
                _
              %s472 = sdiv.u32.pop %s378, 31
              %s473 = srem.u32.pop %s378, 31
              %s474 = smul.u32 %s472, 31
              %s475 = smul.u32 8, %s474
              %s476 = scalar_lea.vmem %s371, %s475 [#allocation2]
              %s477 = smul.u32 8, %s474
              %s478 = scalar_lea.vmem %s383, %s477
              // While loop
              $region52: #{tpu_custom_call.1} parent=43 // loop_pre_header
                _
              $region53: #{tpu_custom_call.1} parent=43 // loop_header
                %s480 = sphi 0, %s482
                %p481 = scmp.ge.s32.totalorder %s480, %s473
                %s485 = sphi 0, %s492
                %s486 = sphi %s476, %s495
                %s487 = sphi %s478, %s496
              $region54: #{tpu_custom_call.1} parent=43 // loop_header_branch
                %484 = sbr.rel (%p481) target = $region58
              $region55: #{tpu_custom_call.1} parent=43 // loop_body
                %v488 = vld [vmem:[%s486] sm:$0xff]
                %489 = vst [vmem:[%s487] sm:$0xff] %v488
                %s490 = sadd.s32 1, %s485
                %p491 = scmp.ge.s32.totalorder %s490, %s473
                %s492 = scalar_select %p491, 0, %s490
                %s493 = smul.u32 %s492, 8
                %s494 = smul.u32 %s492, 8
                %s495 = scalar_lea.vmem %s476, %s493 [#allocation2]
                %s496 = scalar_lea.vmem %s478, %s494
              $region56: #{tpu_custom_call.1} parent=43 // loop_footer
                %s482 = sadd.s32 %s480, 1
              $region57: #{tpu_custom_call.1} parent=43 // loop_footer_branch
                %479 = sbr.rel target = $region53
              $region58: #{tpu_custom_call.1} parent=43 // loop_exit
                _
            $region44: #{tpu_custom_call.1} parent=35 // pred_fallthru
              _
          $region36: #{tpu_custom_call.1} parent=31 // pred_fallthru
            _
          %606 = vnop
        $region32: #{tpu_custom_call.1} parent=27 // pred_fallthru
          _
      $region28: #{tpu_custom_call.1} parent=5 // pred_fallthru
        _
      %p607 = scmp.le.s32.totalorder 2, %s8
      // Predicated region
      $region81: #{tpu_custom_call.1} parent=5 // pred_check
        %p608 = pneg %p607
      $region82: #{tpu_custom_call.1} parent=5 // pred_check_branch
        %610 = sbr.rel (%p608) target = $region84
      $region83: #{tpu_custom_call.1} parent=5 // pred_region
        %s611 = ssub.s32 %s8, 2
        // Predicated region
        $region85: #{tpu_custom_call.1} parent=83 // pred_check
          %p612 = pneg %p107
        $region86: #{tpu_custom_call.1} parent=83 // pred_check_branch
          %614 = sbr.rel (%p612) target = $region88
        $region87: #{tpu_custom_call.1} parent=83 // pred_region
          %s615 = sand.u32 %s92, 1
          %s616 = sand.u32 %s92, 1
          %s617 = smul.addr %s616, 248
          %s618 = scalar_lea.vmem [#allocation2], %s617
        $region88: #{tpu_custom_call.1} parent=83 // pred_fallthru
          _
      $region84: #{tpu_custom_call.1} parent=5 // pred_fallthru
        _
    $region6: #{tpu_custom_call.1} parent=1 // loop_footer
      %s12 = sadd.s32 1, %s8
    $region7: #{tpu_custom_call.1} parent=1 // loop_footer_branch
      %7 = sbr.rel target = $region3
    $region8: #{tpu_custom_call.1} parent=1 // loop_exit
      _

</llo_original>
